<compile_context>
chip_gen: v6e
topology: v6e:2x2x1
jax: 0.10.0
libtpu: 0.0.40
codegen_flags: <defaults>
</compile_context>

<pallas_src>
import functools

import numpy as np
import jax
import jax.numpy as jnp
from jax import lax
from jax.experimental import pallas as pl
from jax.experimental.pallas import tpu as pltpu


def _double_conv_kernel(x_ref, m1_ref, w1_ref, b1_ref, m2_ref, w2_ref, b2_ref,
                        o_ref, *, W):
    """Whole batch in one invocation.

    x_ref  : (Cin_pad, B*H*W) f32   channels on sublanes, B*H*W on lanes
    m1_ref : (9*Cin_pad, B*H*W) f32 per-tap validity mask (pre-broadcast)
    w1_ref : (Cmid, 9*Cin_pad) bf16 conv1 slab, col = (ky*3+kx)*Cin_pad + ci
    b1_ref : (Cmid, 1) f32
    m2_ref : (9*Cmid, B*H*W) f32
    w2_ref : (Cout, 9*Cmid) bf16
    b2_ref : (Cout, 1) f32
    o_ref  : (Cout, B*H*W)
    """
    # Static lane shifts for the 9 conv taps: out[p] = in[p + sy*W + sx].
    shifts = [-(sy * W + sx) for sy in (-1, 0, 1) for sx in (-1, 0, 1)]

    def im2col(arr, mask):
        # arr: (C, B*H*W) -> (9*C, B*H*W), tap-major rows matching the weight
        # slab columns.  The single mask multiply zeroes both the image
        # borders (padding=1 semantics) and any cross-image roll wrap.
        parts = [jnp.roll(arr, s, axis=1) if s else arr for s in shifts]
        return jnp.concatenate(parts, axis=0) * mask

    x = x_ref[...]                                             # (Cin_pad, BHW) f32

    # ---- conv1 + ReLU: one MXU matmul, bf16 operands, f32 accumulate ----
    p1 = im2col(x, m1_ref[...]).astype(jnp.bfloat16)           # (9*Cin_pad, BHW)
    y1 = jnp.maximum(
        jnp.dot(w1_ref[...], p1, preferred_element_type=jnp.float32)
        + b1_ref[...], 0.0)                                    # (Cmid, BHW) f32

    # ---- conv2 + ReLU ----
    p2 = im2col(y1, m2_ref[...]).astype(jnp.bfloat16)          # (9*Cmid, BHW)
    y2 = jnp.maximum(
        jnp.dot(w2_ref[...], p2, preferred_element_type=jnp.float32)
        + b2_ref[...], 0.0)                                    # (Cout, BHW) f32

    o_ref[...] = y2.astype(o_ref.dtype)


def _tap_masks(C, B, H, W):
    """(9*C, B*H*W) f32 tap-validity mask, tap-major, pre-broadcast over C."""
    HW = H * W
    pos = np.arange(B * HW)
    h = (pos % HW) // W
    w = pos % W
    rows = []
    for sy in (-1, 0, 1):
        for sx in (-1, 0, 1):
            valid = ((h + sy >= 0) & (h + sy < H) &
                     (w + sx >= 0) & (w + sx < W)).astype(np.float32)
            rows.append(np.broadcast_to(valid, (C, B * HW)))
    return np.concatenate(rows, axis=0)


@jax.jit
def double_conv(x_nchw, w1, b1, w2, b2):
    """x_nchw: (B, Cin, H, W); weights in PyTorch layout (Cout, Cin, 3, 3)."""
    B, Cin, H, W = x_nchw.shape
    Cmid = w1.shape[0]
    Cout = w2.shape[0]
    HW = H * W
    BHW = B * HW

    # Pad input channels to a multiple of 8 so im2col tap blocks are
    # sublane-aligned; the zero channels contribute nothing to the conv.
    Cin_pad = max(8, -(-Cin // 8) * 8)

    # Fold batch into the lane axis: (B, Cin, H, W) -> (Cin, B*H*W).
    x_cf = jnp.transpose(x_nchw.reshape(B, Cin, HW), (1, 0, 2)).reshape(Cin, BHW)
    if Cin_pad != Cin:
        x_cf = jnp.pad(x_cf, ((0, Cin_pad - Cin), (0, 0)))
        w1 = jnp.pad(w1, ((0, 0), (0, Cin_pad - Cin), (0, 0), (0, 0)))

    # (Cout, Cin, kh, kw) -> (Cout, kh, kw, Cin) -> (Cout, 9*Cin); column
    # index (ky*3+kx)*Cin + ci matches the im2col tap-major row order.
    w1_slab = jnp.transpose(w1, (0, 2, 3, 1)).reshape(Cmid, 9 * Cin_pad)
    w2_slab = jnp.transpose(w2, (0, 2, 3, 1)).reshape(Cout, 9 * Cmid)
    w1_slab = w1_slab.astype(jnp.bfloat16)
    w2_slab = w2_slab.astype(jnp.bfloat16)
    b1_col = b1.reshape(Cmid, 1).astype(jnp.float32)
    b2_col = b2.reshape(Cout, 1).astype(jnp.float32)

    # Compile-time constant masks (numpy -> embedded constants, no XLA ops).
    m1 = jnp.asarray(_tap_masks(Cin_pad, B, H, W))
    m2 = m1 if Cmid == Cin_pad else jnp.asarray(_tap_masks(Cmid, B, H, W))

    kernel = functools.partial(_double_conv_kernel, W=W)

    out_cf = pl.pallas_call(
        kernel,
        out_shape=jax.ShapeDtypeStruct((Cout, BHW), x_nchw.dtype),
        grid_spec=pltpu.PrefetchScalarGridSpec(
            num_scalar_prefetch=0,
            grid=(1,),
            in_specs=[
                pl.BlockSpec((Cin_pad, BHW), lambda i: (0, 0)),
                pl.BlockSpec((9 * Cin_pad, BHW), lambda i: (0, 0)),
                pl.BlockSpec((Cmid, 9 * Cin_pad), lambda i: (0, 0)),
                pl.BlockSpec((Cmid, 1), lambda i: (0, 0)),
                pl.BlockSpec((9 * Cmid, BHW), lambda i: (0, 0)),
                pl.BlockSpec((Cout, 9 * Cmid), lambda i: (0, 0)),
                pl.BlockSpec((Cout, 1), lambda i: (0, 0)),
            ],
            out_specs=pl.BlockSpec((Cout, BHW), lambda i: (0, 0)),
        ),
        compiler_params=pltpu.CompilerParams(
            dimension_semantics=("arbitrary",),
        ),
    )(x_cf, m1, w1_slab, b1_col, m2, w2_slab, b2_col)

    # (Cout, B*H*W) -> (B, Cout, H, W).
    return jnp.transpose(out_cf.reshape(Cout, B, H, W), (1, 0, 2, 3))


def _reference(x_nchw, w1, b1, w2, b2):
    """Pure-JAX reference mirroring nn.Conv2d(padding=1) + ReLU twice."""
    dn = lax.conv_dimension_numbers(x_nchw.shape, w1.shape,
                                    ("NCHW", "OIHW", "NCHW"))
    y = lax.conv_general_dilated(x_nchw, w1, (1, 1), ((1, 1), (1, 1)),
                                 dimension_numbers=dn,
                                 precision=lax.Precision.HIGHEST)
    y = jnp.maximum(y + b1[None, :, None, None], 0.0)
    y = lax.conv_general_dilated(y, w2, (1, 1), ((1, 1), (1, 1)),
                                 dimension_numbers=dn,
                                 precision=lax.Precision.HIGHEST)
    y = jnp.maximum(y + b2[None, :, None, None], 0.0)
    return y


if __name__ == "__main__":
    B, Cin, H, W = 2, 4, 16, 16
    Cout = 8  # out_ch of DoubleConv(in_ch=4, out_ch=8)

    key = jax.random.PRNGKey(0)
    k_x, k_w1, k_b1, k_w2, k_b2 = jax.random.split(key, 5)

    x = jax.random.normal(k_x, (B, Cin, H, W), jnp.float32)
    # Deterministic synthetic parameters (PyTorch shapes: Conv2d(out, in, 3, 3)).
    w1 = jax.random.normal(k_w1, (Cout, Cin, 3, 3), jnp.float32) * 0.1
    b1 = jax.random.normal(k_b1, (Cout,), jnp.float32) * 0.1
    w2 = jax.random.normal(k_w2, (Cout, Cout, 3, 3), jnp.float32) * 0.1
    b2 = jax.random.normal(k_b2, (Cout,), jnp.float32) * 0.1

    out = double_conv(x, w1, b1, w2, b2)
    jax.block_until_ready(out)

    ref = _reference(x, w1, b1, w2, b2)
    assert out.shape == (B, Cout, H, W), out.shape
    # bf16 MXU operands (f32 accumulation) -> tolerance relaxed vs bit-tight f32.
    assert jnp.allclose(out, ref, atol=3e-2, rtol=3e-2), (
        "max abs err = %f" % float(jnp.max(jnp.abs(out - ref))))

    print("KERNEL_OK")
</pallas_src>

<mosaic_0001>
module attributes {stable_mosaic.version = 11 : i64} {
  func.func @_double_conv_kernel(%arg0: i32, %arg1: memref<8x512xf32, #tpu.memory_space<vmem>>, %arg2: memref<72x512xf32, #tpu.memory_space<vmem>>, %arg3: memref<8x72xbf16, #tpu.memory_space<vmem>>, %arg4: memref<8x1xf32, #tpu.memory_space<vmem>>, %arg5: memref<72x512xf32, #tpu.memory_space<vmem>>, %arg6: memref<8x72xbf16, #tpu.memory_space<vmem>>, %arg7: memref<8x1xf32, #tpu.memory_space<vmem>>, %arg8: memref<8x512xf32, #tpu.memory_space<vmem>>) attributes {dimension_semantics = [#tpu.dimension_semantics<arbitrary>], iteration_bounds = array<i64: 1>, scalar_prefetch = 0 : i64, scratch_operands = 0 : i64, tpu.core_type = #tpu.core_type<tc>, window_params = [{pipeline_mode = #tpu.pipeline_mode<synchronous>, transform_indices = @transform_0, window_bounds = array<i64: 8, 512>}, {pipeline_mode = #tpu.pipeline_mode<synchronous>, transform_indices = @transform_1, window_bounds = array<i64: 72, 512>}, {pipeline_mode = #tpu.pipeline_mode<synchronous>, transform_indices = @transform_2, window_bounds = array<i64: 8, 72>}, {pipeline_mode = #tpu.pipeline_mode<synchronous>, transform_indices = @transform_3, window_bounds = array<i64: 8, 1>}, {pipeline_mode = #tpu.pipeline_mode<synchronous>, transform_indices = @transform_4, window_bounds = array<i64: 72, 512>}, {pipeline_mode = #tpu.pipeline_mode<synchronous>, transform_indices = @transform_5, window_bounds = array<i64: 8, 72>}, {pipeline_mode = #tpu.pipeline_mode<synchronous>, transform_indices = @transform_6, window_bounds = array<i64: 8, 1>}, {pipeline_mode = #tpu.pipeline_mode<synchronous>, transform_indices = @transform_7, window_bounds = array<i64: 8, 512>}]} {
    %c0 = arith.constant 0 : index
    %c0_0 = arith.constant 0 : index
    %0 = vector.load %arg1[%c0, %c0_0] : memref<8x512xf32, #tpu.memory_space<vmem>>, vector<8x512xf32>
    %c0_1 = arith.constant 0 : index
    %c0_2 = arith.constant 0 : index
    %1 = vector.load %arg2[%c0_1, %c0_2] : memref<72x512xf32, #tpu.memory_space<vmem>>, vector<72x512xf32>
    %2 = vector.extract_strided_slice %0 {offsets = [0, 495], sizes = [8, 17], strides = [1, 1]} : vector<8x512xf32> to vector<8x17xf32>
    %3 = vector.extract_strided_slice %0 {offsets = [0, 0], sizes = [8, 495], strides = [1, 1]} : vector<8x512xf32> to vector<8x495xf32>
    %4 = tpu.concatenate %2, %3 in 1 : vector<8x17xf32>, vector<8x495xf32> -> vector<8x512xf32>
    %5 = vector.extract_strided_slice %0 {offsets = [0, 496], sizes = [8, 16], strides = [1, 1]} : vector<8x512xf32> to vector<8x16xf32>
    %6 = vector.extract_strided_slice %0 {offsets = [0, 0], sizes = [8, 496], strides = [1, 1]} : vector<8x512xf32> to vector<8x496xf32>
    %7 = tpu.concatenate %5, %6 in 1 : vector<8x16xf32>, vector<8x496xf32> -> vector<8x512xf32>
    %8 = vector.extract_strided_slice %0 {offsets = [0, 497], sizes = [8, 15], strides = [1, 1]} : vector<8x512xf32> to vector<8x15xf32>
    %9 = vector.extract_strided_slice %0 {offsets = [0, 0], sizes = [8, 497], strides = [1, 1]} : vector<8x512xf32> to vector<8x497xf32>
    %10 = tpu.concatenate %8, %9 in 1 : vector<8x15xf32>, vector<8x497xf32> -> vector<8x512xf32>
    %11 = vector.extract_strided_slice %0 {offsets = [0, 511], sizes = [8, 1], strides = [1, 1]} : vector<8x512xf32> to vector<8x1xf32>
    %12 = vector.extract_strided_slice %0 {offsets = [0, 0], sizes = [8, 511], strides = [1, 1]} : vector<8x512xf32> to vector<8x511xf32>
    %13 = tpu.concatenate %11, %12 in 1 : vector<8x1xf32>, vector<8x511xf32> -> vector<8x512xf32>
    %14 = vector.extract_strided_slice %0 {offsets = [0, 1], sizes = [8, 511], strides = [1, 1]} : vector<8x512xf32> to vector<8x511xf32>
    %15 = vector.extract_strided_slice %0 {offsets = [0, 0], sizes = [8, 1], strides = [1, 1]} : vector<8x512xf32> to vector<8x1xf32>
    %16 = tpu.concatenate %14, %15 in 1 : vector<8x511xf32>, vector<8x1xf32> -> vector<8x512xf32>
    %17 = vector.extract_strided_slice %0 {offsets = [0, 15], sizes = [8, 497], strides = [1, 1]} : vector<8x512xf32> to vector<8x497xf32>
    %18 = vector.extract_strided_slice %0 {offsets = [0, 0], sizes = [8, 15], strides = [1, 1]} : vector<8x512xf32> to vector<8x15xf32>
    %19 = tpu.concatenate %17, %18 in 1 : vector<8x497xf32>, vector<8x15xf32> -> vector<8x512xf32>
    %20 = vector.extract_strided_slice %0 {offsets = [0, 16], sizes = [8, 496], strides = [1, 1]} : vector<8x512xf32> to vector<8x496xf32>
    %21 = vector.extract_strided_slice %0 {offsets = [0, 0], sizes = [8, 16], strides = [1, 1]} : vector<8x512xf32> to vector<8x16xf32>
    %22 = tpu.concatenate %20, %21 in 1 : vector<8x496xf32>, vector<8x16xf32> -> vector<8x512xf32>
    %23 = vector.extract_strided_slice %0 {offsets = [0, 17], sizes = [8, 495], strides = [1, 1]} : vector<8x512xf32> to vector<8x495xf32>
    %24 = vector.extract_strided_slice %0 {offsets = [0, 0], sizes = [8, 17], strides = [1, 1]} : vector<8x512xf32> to vector<8x17xf32>
    %25 = tpu.concatenate %23, %24 in 1 : vector<8x495xf32>, vector<8x17xf32> -> vector<8x512xf32>
    %26 = tpu.concatenate %4, %7, %10, %13, %0, %16, %19, %22, %25 in 0 : vector<8x512xf32>, vector<8x512xf32>, vector<8x512xf32>, vector<8x512xf32>, vector<8x512xf32>, vector<8x512xf32>, vector<8x512xf32>, vector<8x512xf32>, vector<8x512xf32> -> vector<72x512xf32>
    %27 = arith.mulf %26, %1 : vector<72x512xf32>
    %28 = arith.truncf %27 : vector<72x512xf32> to vector<72x512xbf16>
    %c0_3 = arith.constant 0 : index
    %c0_4 = arith.constant 0 : index
    %29 = vector.load %arg3[%c0_3, %c0_4] : memref<8x72xbf16, #tpu.memory_space<vmem>>, vector<8x72xbf16>
    %cst = arith.constant dense<0.000000e+00> : vector<8x512xf32>
    %30 = tpu.matmul %29, %28, %cst {dimension_numbers = #tpu.dot_dimension_numbers<[1], [0], [0], [1], [0, 0, 1, 1], [], []>} : vector<8x72xbf16>, vector<72x512xbf16>, vector<8x512xf32> -> vector<8x512xf32>
    %c0_5 = arith.constant 0 : index
    %c0_6 = arith.constant 0 : index
    %31 = vector.load %arg4[%c0_5, %c0_6] : memref<8x1xf32, #tpu.memory_space<vmem>>, vector<8x1xf32>
    %32 = vector.broadcast %31 : vector<8x1xf32> to vector<8x512xf32>
    %33 = arith.addf %30, %32 : vector<8x512xf32>
    %cst_7 = arith.constant 0.000000e+00 : f32
    %34 = vector.broadcast %cst_7 : f32 to vector<8x512xf32>
    %35 = arith.maximumf %33, %34 : vector<8x512xf32>
    %c0_8 = arith.constant 0 : index
    %c0_9 = arith.constant 0 : index
    %36 = vector.load %arg5[%c0_8, %c0_9] : memref<72x512xf32, #tpu.memory_space<vmem>>, vector<72x512xf32>
    %37 = vector.extract_strided_slice %35 {offsets = [0, 495], sizes = [8, 17], strides = [1, 1]} : vector<8x512xf32> to vector<8x17xf32>
    %38 = vector.extract_strided_slice %35 {offsets = [0, 0], sizes = [8, 495], strides = [1, 1]} : vector<8x512xf32> to vector<8x495xf32>
    %39 = tpu.concatenate %37, %38 in 1 : vector<8x17xf32>, vector<8x495xf32> -> vector<8x512xf32>
    %40 = vector.extract_strided_slice %35 {offsets = [0, 496], sizes = [8, 16], strides = [1, 1]} : vector<8x512xf32> to vector<8x16xf32>
    %41 = vector.extract_strided_slice %35 {offsets = [0, 0], sizes = [8, 496], strides = [1, 1]} : vector<8x512xf32> to vector<8x496xf32>
    %42 = tpu.concatenate %40, %41 in 1 : vector<8x16xf32>, vector<8x496xf32> -> vector<8x512xf32>
    %43 = vector.extract_strided_slice %35 {offsets = [0, 497], sizes = [8, 15], strides = [1, 1]} : vector<8x512xf32> to vector<8x15xf32>
    %44 = vector.extract_strided_slice %35 {offsets = [0, 0], sizes = [8, 497], strides = [1, 1]} : vector<8x512xf32> to vector<8x497xf32>
    %45 = tpu.concatenate %43, %44 in 1 : vector<8x15xf32>, vector<8x497xf32> -> vector<8x512xf32>
    %46 = vector.extract_strided_slice %35 {offsets = [0, 511], sizes = [8, 1], strides = [1, 1]} : vector<8x512xf32> to vector<8x1xf32>
    %47 = vector.extract_strided_slice %35 {offsets = [0, 0], sizes = [8, 511], strides = [1, 1]} : vector<8x512xf32> to vector<8x511xf32>
    %48 = tpu.concatenate %46, %47 in 1 : vector<8x1xf32>, vector<8x511xf32> -> vector<8x512xf32>
    %49 = vector.extract_strided_slice %35 {offsets = [0, 1], sizes = [8, 511], strides = [1, 1]} : vector<8x512xf32> to vector<8x511xf32>
    %50 = vector.extract_strided_slice %35 {offsets = [0, 0], sizes = [8, 1], strides = [1, 1]} : vector<8x512xf32> to vector<8x1xf32>
    %51 = tpu.concatenate %49, %50 in 1 : vector<8x511xf32>, vector<8x1xf32> -> vector<8x512xf32>
    %52 = vector.extract_strided_slice %35 {offsets = [0, 15], sizes = [8, 497], strides = [1, 1]} : vector<8x512xf32> to vector<8x497xf32>
    %53 = vector.extract_strided_slice %35 {offsets = [0, 0], sizes = [8, 15], strides = [1, 1]} : vector<8x512xf32> to vector<8x15xf32>
    %54 = tpu.concatenate %52, %53 in 1 : vector<8x497xf32>, vector<8x15xf32> -> vector<8x512xf32>
    %55 = vector.extract_strided_slice %35 {offsets = [0, 16], sizes = [8, 496], strides = [1, 1]} : vector<8x512xf32> to vector<8x496xf32>
    %56 = vector.extract_strided_slice %35 {offsets = [0, 0], sizes = [8, 16], strides = [1, 1]} : vector<8x512xf32> to vector<8x16xf32>
    %57 = tpu.concatenate %55, %56 in 1 : vector<8x496xf32>, vector<8x16xf32> -> vector<8x512xf32>
    %58 = vector.extract_strided_slice %35 {offsets = [0, 17], sizes = [8, 495], strides = [1, 1]} : vector<8x512xf32> to vector<8x495xf32>
    %59 = vector.extract_strided_slice %35 {offsets = [0, 0], sizes = [8, 17], strides = [1, 1]} : vector<8x512xf32> to vector<8x17xf32>
    %60 = tpu.concatenate %58, %59 in 1 : vector<8x495xf32>, vector<8x17xf32> -> vector<8x512xf32>
    %61 = tpu.concatenate %39, %42, %45, %48, %35, %51, %54, %57, %60 in 0 : vector<8x512xf32>, vector<8x512xf32>, vector<8x512xf32>, vector<8x512xf32>, vector<8x512xf32>, vector<8x512xf32>, vector<8x512xf32>, vector<8x512xf32>, vector<8x512xf32> -> vector<72x512xf32>
    %62 = arith.mulf %61, %36 : vector<72x512xf32>
    %63 = arith.truncf %62 : vector<72x512xf32> to vector<72x512xbf16>
    %c0_10 = arith.constant 0 : index
    %c0_11 = arith.constant 0 : index
    %64 = vector.load %arg6[%c0_10, %c0_11] : memref<8x72xbf16, #tpu.memory_space<vmem>>, vector<8x72xbf16>
    %cst_12 = arith.constant dense<0.000000e+00> : vector<8x512xf32>
    %65 = tpu.matmul %64, %63, %cst_12 {dimension_numbers = #tpu.dot_dimension_numbers<[1], [0], [0], [1], [0, 0, 1, 1], [], []>} : vector<8x72xbf16>, vector<72x512xbf16>, vector<8x512xf32> -> vector<8x512xf32>
    %c0_13 = arith.constant 0 : index
    %c0_14 = arith.constant 0 : index
    %66 = vector.load %arg7[%c0_13, %c0_14] : memref<8x1xf32, #tpu.memory_space<vmem>>, vector<8x1xf32>
    %67 = vector.broadcast %66 : vector<8x1xf32> to vector<8x512xf32>
    %68 = arith.addf %65, %67 : vector<8x512xf32>
    %cst_15 = arith.constant 0.000000e+00 : f32
    %69 = vector.broadcast %cst_15 : f32 to vector<8x512xf32>
    %70 = arith.maximumf %68, %69 : vector<8x512xf32>
    %c0_16 = arith.constant 0 : index
    %c0_17 = arith.constant 0 : index
    %71 = vector.load %arg8[%c0_16, %c0_17] : memref<8x512xf32, #tpu.memory_space<vmem>>, vector<8x512xf32>
    tpu.vector_store %arg8[%c0_16, %c0_17], %70 {strides = array<i32>} : memref<8x512xf32, #tpu.memory_space<vmem>>, vector<8x512xf32>,
    return
  }
  func.func @transform_0(%arg0: i32) -> (i32, i32) {
    %c0_i32 = arith.constant 0 : i32
    %c0_i32_0 = arith.constant 0 : i32
    %c0_i32_1 = arith.constant 0 : i32
    return %c0_i32, %c0_i32_0 : i32, i32
  }
  func.func @transform_1(%arg0: i32) -> (i32, i32) {
    %c0_i32 = arith.constant 0 : i32
    %c0_i32_0 = arith.constant 0 : i32
    %c0_i32_1 = arith.constant 0 : i32
    return %c0_i32, %c0_i32_0 : i32, i32
  }
  func.func @transform_2(%arg0: i32) -> (i32, i32) {
    %c0_i32 = arith.constant 0 : i32
    %c0_i32_0 = arith.constant 0 : i32
    %c0_i32_1 = arith.constant 0 : i32
    return %c0_i32, %c0_i32_0 : i32, i32
  }
  func.func @transform_3(%arg0: i32) -> (i32, i32) {
    %c0_i32 = arith.constant 0 : i32
    %c0_i32_0 = arith.constant 0 : i32
    %c0_i32_1 = arith.constant 0 : i32
    return %c0_i32, %c0_i32_0 : i32, i32
  }
  func.func @transform_4(%arg0: i32) -> (i32, i32) {
    %c0_i32 = arith.constant 0 : i32
    %c0_i32_0 = arith.constant 0 : i32
    %c0_i32_1 = arith.constant 0 : i32
    return %c0_i32, %c0_i32_0 : i32, i32
  }
  func.func @transform_5(%arg0: i32) -> (i32, i32) {
    %c0_i32 = arith.constant 0 : i32
    %c0_i32_0 = arith.constant 0 : i32
    %c0_i32_1 = arith.constant 0 : i32
    return %c0_i32, %c0_i32_0 : i32, i32
  }
  func.func @transform_6(%arg0: i32) -> (i32, i32) {
    %c0_i32 = arith.constant 0 : i32
    %c0_i32_0 = arith.constant 0 : i32
    %c0_i32_1 = arith.constant 0 : i32
    return %c0_i32, %c0_i32_0 : i32, i32
  }
  func.func @transform_7(%arg0: i32) -> (i32, i32) {
    %c0_i32 = arith.constant 0 : i32
    %c0_i32_0 = arith.constant 0 : i32
    %c0_i32_1 = arith.constant 0 : i32
    return %c0_i32, %c0_i32_0 : i32, i32
  }
}

</mosaic_0001>

<llo_original>
// kernel: double_conv.1
$region0: #{double_conv.1}
  #allocation0 [shape = 'u32[]', space=smem, size = 0x4, offset = 0x4, fixed_abs, tag = 'smem constant byte address 0x4 - core index']
  #allocation1 [shape = 'u32[144,128]{1,0:T(1,128)}', space=vmem, size = 0x12000, scoped, tag = 'internal scratch']
  %s0 = inlined_call_operand.vmem [shape: f32[8,512], index: 0, kind: input, shape index: {}]
  %s1 = inlined_call_operand.vmem [shape: f32[72,512], index: 1, kind: input, shape index: {}, may-alias: {1,4}]
  %s2 = inlined_call_operand.vmem [shape: bf16[8,72], index: 2, kind: input, shape index: {}]
  %s3 = inlined_call_operand.vmem [shape: f32[8,1], index: 3, kind: input, shape index: {}]
  %s4 = inlined_call_operand.vmem [shape: f32[72,512], index: 4, kind: input, shape index: {}, may-alias: {1,4}]
  %s5 = inlined_call_operand.vmem [shape: bf16[8,72], index: 5, kind: input, shape index: {}]
  %s6 = inlined_call_operand.vmem [shape: f32[8,1], index: 6, kind: input, shape index: {}]
  %s7 = inlined_call_operand.vmem [shape: f32[8,512], index: 7, kind: output, shape index: {}]
  %s8 = sld [smem:[#allocation0]]
  $region38: #{double_conv.1} parent=0
    _
  %s10 = ssub.s32 1, %s8
  %s11 = scalar_select 0, %s10, %s8
  // Predicated region
  $region2: #{double_conv.1} parent=0 // pred_check
    _
  $region3: #{double_conv.1} parent=0 // pred_check_branch
    %13 = sbr.rel (0) target = $region5
  $region4: #{double_conv.1} parent=0 // pred_region
    _
  $region5: #{double_conv.1} parent=0 // pred_fallthru
    _
  // Predicated region
  $region6: #{double_conv.1} parent=0 // pred_check
    _
  $region7: #{double_conv.1} parent=0 // pred_check_branch
    %15 = sbr.rel (0) target = $region9
  $region8: #{double_conv.1} parent=0 // pred_region
    _
  $region9: #{double_conv.1} parent=0 // pred_fallthru
    _
  // Predicated region
  $region10: #{double_conv.1} parent=0 // pred_check
    _
  $region11: #{double_conv.1} parent=0 // pred_check_branch
    %17 = sbr.rel (0) target = $region13
  $region12: #{double_conv.1} parent=0 // pred_region
    _
  $region13: #{double_conv.1} parent=0 // pred_fallthru
    _
  // Predicated region
  $region14: #{double_conv.1} parent=0 // pred_check
    _
  $region15: #{double_conv.1} parent=0 // pred_check_branch
    %19 = sbr.rel (0) target = $region17
  $region16: #{double_conv.1} parent=0 // pred_region
    _
  $region17: #{double_conv.1} parent=0 // pred_fallthru
    _
  // Predicated region
  $region18: #{double_conv.1} parent=0 // pred_check
    _
  $region19: #{double_conv.1} parent=0 // pred_check_branch
    %21 = sbr.rel (0) target = $region21
  $region20: #{double_conv.1} parent=0 // pred_region
    _
  $region21: #{double_conv.1} parent=0 // pred_fallthru
    _
  // Predicated region
  $region22: #{double_conv.1} parent=0 // pred_check
    _
  $region23: #{double_conv.1} parent=0 // pred_check_branch
    %23 = sbr.rel (0) target = $region25
  $region24: #{double_conv.1} parent=0 // pred_region
    _
  $region25: #{double_conv.1} parent=0 // pred_fallthru
    _
  // Predicated region
  $region26: #{double_conv.1} parent=0 // pred_check
    _
  $region27: #{double_conv.1} parent=0 // pred_check_branch
    %25 = sbr.rel (0) target = $region29
  $region28: #{double_conv.1} parent=0 // pred_region
    _
  $region29: #{double_conv.1} parent=0 // pred_fallthru
    _
  %v27 = vld [vmem:[%s0] sm:$0xff]
  %v28 = vld [vmem:[%s0 + $0x8] sm:$0xff]
  %v29 = vld [vmem:[%s0 + $0x10] sm:$0xff]
  %v30 = vld [vmem:[%s0 + $0x18] sm:$0xff]
  %v31 = vld [vmem:[%s1] sm:$0xff]
  %v32 = vld [vmem:[%s1 + $0x8] sm:$0xff]
  %v33 = vld [vmem:[%s1 + $0x10] sm:$0xff]
  %v34 = vld [vmem:[%s1 + $0x18] sm:$0xff]
  %v35 = vld [vmem:[%s1 + $0x20] sm:$0xff]
  %v36 = vld [vmem:[%s1 + $0x28] sm:$0xff]
  %v37 = vld [vmem:[%s1 + $0x30] sm:$0xff]
  %v38 = vld [vmem:[%s1 + $0x38] sm:$0xff]
  %v39 = vld [vmem:[%s1 + $0x40] sm:$0xff]
  %v40 = vld [vmem:[%s1 + $0x48] sm:$0xff]
  %v41 = vld [vmem:[%s1 + $0x50] sm:$0xff]
  %v42 = vld [vmem:[%s1 + $0x58] sm:$0xff]
  %v43 = vld [vmem:[%s1 + $0x60] sm:$0xff]
  %v44 = vld [vmem:[%s1 + $0x68] sm:$0xff]
  %v45 = vld [vmem:[%s1 + $0x70] sm:$0xff]
  %v46 = vld [vmem:[%s1 + $0x78] sm:$0xff]
  %v47 = vld [vmem:[%s1 + $0x80] sm:$0xff]
  %v48 = vld [vmem:[%s1 + $0x88] sm:$0xff]
  %v49 = vld [vmem:[%s1 + $0x90] sm:$0xff]
  %v50 = vld [vmem:[%s1 + $0x98] sm:$0xff]
  %v51 = vld [vmem:[%s1 + $0xa0] sm:$0xff]
  %v52 = vld [vmem:[%s1 + $0xa8] sm:$0xff]
  %v53 = vld [vmem:[%s1 + $0xb0] sm:$0xff]
  %v54 = vld [vmem:[%s1 + $0xb8] sm:$0xff]
  %v55 = vld [vmem:[%s1 + $0xc0] sm:$0xff]
  %v56 = vld [vmem:[%s1 + $0xc8] sm:$0xff]
  %v57 = vld [vmem:[%s1 + $0xd0] sm:$0xff]
  %v58 = vld [vmem:[%s1 + $0xd8] sm:$0xff]
  %v59 = vld [vmem:[%s1 + $0xe0] sm:$0xff]
  %v60 = vld [vmem:[%s1 + $0xe8] sm:$0xff]
  %v61 = vld [vmem:[%s1 + $0xf0] sm:$0xff]
  %v62 = vld [vmem:[%s1 + $0xf8] sm:$0xff]
  %v63 = vld [vmem:[%s1 + $0x100] sm:$0xff]
  %v64 = vld [vmem:[%s1 + $0x108] sm:$0xff]
  %v65 = vld [vmem:[%s1 + $0x110] sm:$0xff]
  %v66 = vld [vmem:[%s1 + $0x118] sm:$0xff]
  %68 = vrot.lane.b32.xlu0 %v30, 17
  %v69 = vpop.permute.xlu0 %68
  %74 = vrot.lane.b32.xlu0 %v27, 17
  %v75 = vpop.permute.xlu0 %74
  %76 = vrot.lane.b32.xlu0 %v28, 17
  %v77 = vpop.permute.xlu0 %76
  %78 = vrot.lane.b32.xlu0 %v29, 17
  %v79 = vpop.permute.xlu0 %78
  %vm80 = vcmask 138240
  %v81 = vsel %vm80, %v75, %v77
  %v82 = vsel %vm80, %v77, %v79
  %v83 = vsel %vm80, %v79, %v69
  %v88 = vsel %vm80, %v69, %v75
  %89 = vrot.lane.b32.xlu0 %v30, 16
  %v90 = vpop.permute.xlu0 %89
  %92 = vrot.lane.b32.xlu0 %v27, 16
  %v93 = vpop.permute.xlu0 %92
  %94 = vrot.lane.b32.xlu0 %v28, 16
  %v95 = vpop.permute.xlu0 %94
  %96 = vrot.lane.b32.xlu0 %v29, 16
  %v97 = vpop.permute.xlu0 %96
  %vm98 = vcmask 130048
  %v99 = vsel %vm98, %v93, %v95
  %v100 = vsel %vm98, %v95, %v97
  %v101 = vsel %vm98, %v97, %v90
  %v106 = vsel %vm98, %v90, %v93
  %107 = vrot.lane.b32.xlu0 %v30, 15
  %v108 = vpop.permute.xlu0 %107
  %110 = vrot.lane.b32.xlu0 %v27, 15
  %v111 = vpop.permute.xlu0 %110
  %112 = vrot.lane.b32.xlu0 %v28, 15
  %v113 = vpop.permute.xlu0 %112
  %114 = vrot.lane.b32.xlu0 %v29, 15
  %v115 = vpop.permute.xlu0 %114
  %vm116 = vcmask 121856
  %v117 = vsel %vm116, %v111, %v113
  %v118 = vsel %vm116, %v113, %v115
  %v119 = vsel %vm116, %v115, %v108
  %v124 = vsel %vm116, %v108, %v111
  %125 = vrot.lane.b32.xlu0 %v30, 1
  %v126 = vpop.permute.xlu0 %125
  %128 = vrot.lane.b32.xlu0 %v27, 1
  %v129 = vpop.permute.xlu0 %128
  %130 = vrot.lane.b32.xlu0 %v28, 1
  %v131 = vpop.permute.xlu0 %130
  %132 = vrot.lane.b32.xlu0 %v29, 1
  %v133 = vpop.permute.xlu0 %132
  %vm134 = vcmask 7168
  %v135 = vsel %vm134, %v129, %v131
  %v136 = vsel %vm134, %v131, %v133
  %v137 = vsel %vm134, %v133, %v126
  %v142 = vsel %vm134, %v126, %v129
  %143 = vrot.lane.b32.xlu0 %v27, 127
  %v144 = vpop.permute.xlu0 %143
  %145 = vrot.lane.b32.xlu0 %v28, 127
  %v146 = vpop.permute.xlu0 %145
  %147 = vrot.lane.b32.xlu0 %v29, 127
  %v148 = vpop.permute.xlu0 %147
  %149 = vrot.lane.b32.xlu0 %v30, 127
  %v150 = vpop.permute.xlu0 %149
  %vm151 = vcmask 1039360
  %v152 = vsel %vm151, %v144, %v146
  %v153 = vsel %vm151, %v146, %v148
  %v154 = vsel %vm151, %v148, %v150
  %v160 = vsel %vm151, %v150, %v144
  %161 = vrot.lane.b32.xlu0 %v27, 113
  %v162 = vpop.permute.xlu0 %161
  %163 = vrot.lane.b32.xlu0 %v28, 113
  %v164 = vpop.permute.xlu0 %163
  %165 = vrot.lane.b32.xlu0 %v29, 113
  %v166 = vpop.permute.xlu0 %165
  %167 = vrot.lane.b32.xlu0 %v30, 113
  %v168 = vpop.permute.xlu0 %167
  %vm169 = vcmask 924672
  %v170 = vsel %vm169, %v162, %v164
  %v171 = vsel %vm169, %v164, %v166
  %v172 = vsel %vm169, %v166, %v168
  %v178 = vsel %vm169, %v168, %v162
  %179 = vrot.lane.b32.xlu0 %v27, 112
  %v180 = vpop.permute.xlu0 %179
  %181 = vrot.lane.b32.xlu0 %v28, 112
  %v182 = vpop.permute.xlu0 %181
  %183 = vrot.lane.b32.xlu0 %v29, 112
  %v184 = vpop.permute.xlu0 %183
  %185 = vrot.lane.b32.xlu0 %v30, 112
  %v186 = vpop.permute.xlu0 %185
  %vm187 = vcmask 916480
  %v188 = vsel %vm187, %v180, %v182
  %v189 = vsel %vm187, %v182, %v184
  %v190 = vsel %vm187, %v184, %v186
  %v196 = vsel %vm187, %v186, %v180
  %197 = vrot.lane.b32.xlu0 %v27, 111
  %v198 = vpop.permute.xlu0 %197
  %199 = vrot.lane.b32.xlu0 %v28, 111
  %v200 = vpop.permute.xlu0 %199
  %201 = vrot.lane.b32.xlu0 %v29, 111
  %v202 = vpop.permute.xlu0 %201
  %203 = vrot.lane.b32.xlu0 %v30, 111
  %v204 = vpop.permute.xlu0 %203
  %vm205 = vcmask 908288
  %v206 = vsel %vm205, %v198, %v200
  %v207 = vsel %vm205, %v200, %v202
  %v208 = vsel %vm205, %v202, %v204
  %v214 = vsel %vm205, %v204, %v198
  %v215 = vmul.f32 %v88, %v31
  %v216 = vmul.f32 %v81, %v32
  %v217 = vmul.f32 %v82, %v33
  %v218 = vmul.f32 %v83, %v34
  %v219 = vmul.f32 %v106, %v35
  %v220 = vmul.f32 %v99, %v36
  %v221 = vmul.f32 %v100, %v37
  %v222 = vmul.f32 %v101, %v38
  %v223 = vmul.f32 %v124, %v39
  %v224 = vmul.f32 %v117, %v40
  %v225 = vmul.f32 %v118, %v41
  %v226 = vmul.f32 %v119, %v42
  %v227 = vmul.f32 %v142, %v43
  %v228 = vmul.f32 %v135, %v44
  %v229 = vmul.f32 %v136, %v45
  %v230 = vmul.f32 %v137, %v46
  %v231 = vmul.f32 %v27, %v47
  %v232 = vmul.f32 %v28, %v48
  %v233 = vmul.f32 %v29, %v49
  %v234 = vmul.f32 %v30, %v50
  %v235 = vmul.f32 %v152, %v51
  %v236 = vmul.f32 %v153, %v52
  %v237 = vmul.f32 %v154, %v53
  %v238 = vmul.f32 %v160, %v54
  %v239 = vmul.f32 %v170, %v55
  %v240 = vmul.f32 %v171, %v56
  %v241 = vmul.f32 %v172, %v57
  %v242 = vmul.f32 %v178, %v58
  %v243 = vmul.f32 %v188, %v59
  %v244 = vmul.f32 %v189, %v60
  %v245 = vmul.f32 %v190, %v61
  %v246 = vmul.f32 %v196, %v62
  %v247 = vmul.f32 %v206, %v63
  %v248 = vmul.f32 %v207, %v64
  %v249 = vmul.f32 %v208, %v65
  %v250 = vmul.f32 %v214, %v66
  %v251 = vpack.c.bf16 %v219, %v215
  %v252 = vpack.c.bf16 %v220, %v216
  %v253 = vpack.c.bf16 %v221, %v217
  %v254 = vpack.c.bf16 %v222, %v218
  %v255 = vpack.c.bf16 %v227, %v223
  %v256 = vpack.c.bf16 %v228, %v224
  %v257 = vpack.c.bf16 %v229, %v225
  %v258 = vpack.c.bf16 %v230, %v226
  %v259 = vpack.c.bf16 %v235, %v231
  %v260 = vpack.c.bf16 %v236, %v232
  %v261 = vpack.c.bf16 %v237, %v233
  %v262 = vpack.c.bf16 %v238, %v234
  %v263 = vpack.c.bf16 %v243, %v239
  %v264 = vpack.c.bf16 %v244, %v240
  %v265 = vpack.c.bf16 %v245, %v241
  %v266 = vpack.c.bf16 %v246, %v242
  %v267 = vpack.c.bf16 %v247, %v247
  %v268 = vpack.c.bf16 %v248, %v248
  %v269 = vpack.c.bf16 %v249, %v249
  %v270 = vpack.c.bf16 %v250, %v250
  %v271 = vld [vmem:[%s2] sm:$0xf]
  %v272 = vld [vmem:[%s3] sm:$0xff]
  %274 = vset.pattern.permute.xlu0 0
  %275 = vperm.xlu0 %274, %v272
  %v276 = vpop.permute.xlu0 %275
  %vm278 = vcmask 588800
  %v280 = vsel %vm278, %v271, 0
  %vm282 = vcmask 1043456
  %v284 = vsel %vm282, %v267, 0
  %v287 = vsel %vm282, %v268, 0
  %v290 = vsel %vm282, %v269, 0
  %v293 = vsel %vm282, %v270, 0
  %295 = vmatprep.subr.bf16.mxu0 0
  %296 = vmatpush1.bf16.msra.mxu0 0
  %297 = vmatprep.subr.bf16.mxu0 0
  %298 = vmatpush1.bf16.msra.mxu0 0
  %299 = vmatprep.subr.bf16.mxu0 0
  %300 = vmatpush1.bf16.msra.mxu0 0
  %301 = vmatprep.subr.bf16.mxu0 %v287
  %302 = vmatpush1.bf16.msra.mxu0 %v284
  %303 = vmatprep.subr.bf16.mxu0 %v264
  %304 = vmatpush1.bf16.msra.mxu0 %v263
  %305 = vmatprep.subr.bf16.mxu0 %v260
  %306 = vmatpush1.bf16.msra.mxu0 %v259
  %307 = vmatprep.subr.bf16.mxu0 %v256
  %308 = vmatpush1.bf16.msra.mxu0 %v255
  %309 = vmatprep.subr.bf16.mxu0 %v252
  %310 = vmatpush1.bf16.msra.mxu0 %v251
  %311 = vmatprep.subr.bf16.mxu0 0
  %312 = vmatpush2.bf16.msra.mxu0 0
  %313 = vmatprep.subr.bf16.mxu0 0
  %314 = vmatpush2.bf16.msra.mxu0 0
  %315 = vmatprep.subr.bf16.mxu0 0
  %316 = vmatpush2.bf16.msra.mxu0 0
  %317 = vmatprep.subr.bf16.mxu0 0
  %318 = vmatpush2.bf16.msra.mxu0 0
  %319 = vmatprep.subr.bf16.mxu0 0
  %320 = vmatpush2.bf16.msra.mxu0 0
  %321 = vmatprep.subr.bf16.mxu0 0
  %322 = vmatpush2.bf16.msra.mxu0 0
  %323 = vmatprep.subr.bf16.mxu0 0
  %324 = vmatpush2.bf16.msra.mxu0 0
  %325 = vmatprep.subr.bf16.mxu0 0
  %326 = vmatpush2.bf16.msra.mxu0 0
  %327 = vmatprep.mubr.bf16.mxu0 0
  %328 = vmatmul.mubr.bf16.gmra.mxu0 %v280
  %v329 = vpop.f32.mrf.mxu0
  %v330 = vadd.f32 %v276, %v329
  %v331 = vpop.f32.mrf.mxu0
  %v332 = vadd.f32 %v276, %v331
  %v333 = vpop.f32.mrf.mxu0
  %v334 = vpop.f32.mrf.mxu0
  %335 = vdwg.mxu0
  %336 = vmatprep.subr.bf16.mxu0 0
  %337 = vmatpush1.bf16.msra.mxu0 0
  %338 = vmatprep.subr.bf16.mxu0 0
  %339 = vmatpush1.bf16.msra.mxu0 0
  %340 = vmatprep.subr.bf16.mxu0 0
  %341 = vmatpush1.bf16.msra.mxu0 0
  %342 = vmatprep.subr.bf16.mxu0 %v293
  %343 = vmatpush1.bf16.msra.mxu0 %v290
  %344 = vmatprep.subr.bf16.mxu0 %v266
  %345 = vmatpush1.bf16.msra.mxu0 %v265
  %346 = vmatprep.subr.bf16.mxu0 %v262
  %347 = vmatpush1.bf16.msra.mxu0 %v261
  %348 = vmatprep.subr.bf16.mxu0 %v258
  %349 = vmatpush1.bf16.msra.mxu0 %v257
  %350 = vmatprep.subr.bf16.mxu0 %v254
  %351 = vmatpush1.bf16.msra.mxu0 %v253
  %352 = vmatprep.subr.bf16.mxu0 0
  %353 = vmatpush2.bf16.msra.mxu0 0
  %354 = vmatprep.subr.bf16.mxu0 0
  %355 = vmatpush2.bf16.msra.mxu0 0
  %356 = vmatprep.subr.bf16.mxu0 0
  %357 = vmatpush2.bf16.msra.mxu0 0
  %358 = vmatprep.subr.bf16.mxu0 0
  %359 = vmatpush2.bf16.msra.mxu0 0
  %360 = vmatprep.subr.bf16.mxu0 0
  %361 = vmatpush2.bf16.msra.mxu0 0
  %362 = vmatprep.subr.bf16.mxu0 0
  %363 = vmatpush2.bf16.msra.mxu0 0
  %364 = vmatprep.subr.bf16.mxu0 0
  %365 = vmatpush2.bf16.msra.mxu0 0
  %366 = vmatprep.subr.bf16.mxu0 0
  %367 = vmatpush2.bf16.msra.mxu0 0
  %368 = vmatprep.mubr.bf16.mxu0 0
  %369 = vmatmul.mubr.bf16.gmra.mxu0 %v280
  %v370 = vpop.f32.mrf.mxu0
  %v371 = vadd.f32 %v276, %v370
  %v372 = vpop.f32.mrf.mxu0
  %v373 = vadd.f32 %v276, %v372
  %v374 = vpop.f32.mrf.mxu0
  %v375 = vpop.f32.mrf.mxu0
  %376 = vdwg.mxu0
  %v377 = vmax.f32 %v330, 0.0
  %v378 = vmax.f32 %v332, 0.0
  %v379 = vmax.f32 %v371, 0.0
  %v380 = vmax.f32 %v373, 0.0
  %v381 = vld [vmem:[%s4] sm:$0xff]
  %v382 = vld [vmem:[%s4 + $0x8] sm:$0xff]
  %v383 = vld [vmem:[%s4 + $0x10] sm:$0xff]
  %v384 = vld [vmem:[%s4 + $0x18] sm:$0xff]
  %v385 = vld [vmem:[%s4 + $0x20] sm:$0xff]
  %v386 = vld [vmem:[%s4 + $0x28] sm:$0xff]
  %v387 = vld [vmem:[%s4 + $0x30] sm:$0xff]
  %v388 = vld [vmem:[%s4 + $0x38] sm:$0xff]
  %v389 = vld [vmem:[%s4 + $0x40] sm:$0xff]
  %v390 = vld [vmem:[%s4 + $0x48] sm:$0xff]
  %v391 = vld [vmem:[%s4 + $0x50] sm:$0xff]
  %v392 = vld [vmem:[%s4 + $0x58] sm:$0xff]
  %v393 = vld [vmem:[%s4 + $0x60] sm:$0xff]
  %v394 = vld [vmem:[%s4 + $0x68] sm:$0xff]
  %v395 = vld [vmem:[%s4 + $0x70] sm:$0xff]
  %v396 = vld [vmem:[%s4 + $0x78] sm:$0xff]
  %v397 = vld [vmem:[%s4 + $0x80] sm:$0xff]
  %v398 = vld [vmem:[%s4 + $0x88] sm:$0xff]
  %v399 = vld [vmem:[%s4 + $0x90] sm:$0xff]
  %v400 = vld [vmem:[%s4 + $0x98] sm:$0xff]
  %v401 = vld [vmem:[%s4 + $0xa0] sm:$0xff]
  %v402 = vld [vmem:[%s4 + $0xa8] sm:$0xff]
  %v403 = vld [vmem:[%s4 + $0xb0] sm:$0xff]
  %v404 = vld [vmem:[%s4 + $0xb8] sm:$0xff]
  %v405 = vld [vmem:[%s4 + $0xc0] sm:$0xff]
  %v406 = vld [vmem:[%s4 + $0xc8] sm:$0xff]
  %v407 = vld [vmem:[%s4 + $0xd0] sm:$0xff]
  %v408 = vld [vmem:[%s4 + $0xd8] sm:$0xff]
  %v409 = vld [vmem:[%s4 + $0xe0] sm:$0xff]
  %v410 = vld [vmem:[%s4 + $0xe8] sm:$0xff]
  %v411 = vld [vmem:[%s4 + $0xf0] sm:$0xff]
  %v412 = vld [vmem:[%s4 + $0xf8] sm:$0xff]
  %v413 = vld [vmem:[%s4 + $0x100] sm:$0xff]
  %v414 = vld [vmem:[%s4 + $0x108] sm:$0xff]
  %v415 = vld [vmem:[%s4 + $0x110] sm:$0xff]
  %v416 = vld [vmem:[%s4 + $0x118] sm:$0xff]
  %418 = vrot.lane.b32.xlu0 %v380, 17
  %v419 = vpop.permute.xlu0 %418
  %424 = vrot.lane.b32.xlu0 %v377, 17
  %v425 = vpop.permute.xlu0 %424
  %426 = vrot.lane.b32.xlu0 %v378, 17
  %v427 = vpop.permute.xlu0 %426
  %428 = vrot.lane.b32.xlu0 %v379, 17
  %v429 = vpop.permute.xlu0 %428
  %v430 = vsel %vm80, %v425, %v427
  %v431 = vsel %vm80, %v427, %v429
  %v432 = vsel %vm80, %v429, %v419
  %v437 = vsel %vm80, %v419, %v425
  %438 = vrot.lane.b32.xlu0 %v380, 16
  %v439 = vpop.permute.xlu0 %438
  %441 = vrot.lane.b32.xlu0 %v377, 16
  %v442 = vpop.permute.xlu0 %441
  %443 = vrot.lane.b32.xlu0 %v378, 16
  %v444 = vpop.permute.xlu0 %443
  %445 = vrot.lane.b32.xlu0 %v379, 16
  %v446 = vpop.permute.xlu0 %445
  %v447 = vsel %vm98, %v442, %v444
  %v448 = vsel %vm98, %v444, %v446
  %v449 = vsel %vm98, %v446, %v439
  %v454 = vsel %vm98, %v439, %v442
  %455 = vrot.lane.b32.xlu0 %v380, 15
  %v456 = vpop.permute.xlu0 %455
  %458 = vrot.lane.b32.xlu0 %v377, 15
  %v459 = vpop.permute.xlu0 %458
  %460 = vrot.lane.b32.xlu0 %v378, 15
  %v461 = vpop.permute.xlu0 %460
  %462 = vrot.lane.b32.xlu0 %v379, 15
  %v463 = vpop.permute.xlu0 %462
  %v464 = vsel %vm116, %v459, %v461
  %v465 = vsel %vm116, %v461, %v463
  %v466 = vsel %vm116, %v463, %v456
  %v471 = vsel %vm116, %v456, %v459
  %472 = vrot.lane.b32.xlu0 %v380, 1
  %v473 = vpop.permute.xlu0 %472
  %475 = vrot.lane.b32.xlu0 %v377, 1
  %v476 = vpop.permute.xlu0 %475
  %477 = vrot.lane.b32.xlu0 %v378, 1
  %v478 = vpop.permute.xlu0 %477
  %479 = vrot.lane.b32.xlu0 %v379, 1
  %v480 = vpop.permute.xlu0 %479
  %v481 = vsel %vm134, %v476, %v478
  %v482 = vsel %vm134, %v478, %v480
  %v483 = vsel %vm134, %v480, %v473
  %v488 = vsel %vm134, %v473, %v476
  %489 = vrot.lane.b32.xlu0 %v377, 127
  %v490 = vpop.permute.xlu0 %489
  %491 = vrot.lane.b32.xlu0 %v378, 127
  %v492 = vpop.permute.xlu0 %491
  %493 = vrot.lane.b32.xlu0 %v379, 127
  %v494 = vpop.permute.xlu0 %493
  %495 = vrot.lane.b32.xlu0 %v380, 127
  %v496 = vpop.permute.xlu0 %495
  %v497 = vsel %vm151, %v490, %v492
  %v498 = vsel %vm151, %v492, %v494
  %v499 = vsel %vm151, %v494, %v496
  %v505 = vsel %vm151, %v496, %v490
  %506 = vrot.lane.b32.xlu0 %v377, 113
  %v507 = vpop.permute.xlu0 %506
  %508 = vrot.lane.b32.xlu0 %v378, 113
  %v509 = vpop.permute.xlu0 %508
  %510 = vrot.lane.b32.xlu0 %v379, 113
  %v511 = vpop.permute.xlu0 %510
  %512 = vrot.lane.b32.xlu0 %v380, 113
  %v513 = vpop.permute.xlu0 %512
  %v514 = vsel %vm169, %v507, %v509
  %v515 = vsel %vm169, %v509, %v511
  %v516 = vsel %vm169, %v511, %v513
  %v522 = vsel %vm169, %v513, %v507
  %523 = vrot.lane.b32.xlu0 %v377, 112
  %v524 = vpop.permute.xlu0 %523
  %525 = vrot.lane.b32.xlu0 %v378, 112
  %v526 = vpop.permute.xlu0 %525
  %527 = vrot.lane.b32.xlu0 %v379, 112
  %v528 = vpop.permute.xlu0 %527
  %529 = vrot.lane.b32.xlu0 %v380, 112
  %v530 = vpop.permute.xlu0 %529
  %v531 = vsel %vm187, %v524, %v526
  %v532 = vsel %vm187, %v526, %v528
  %v533 = vsel %vm187, %v528, %v530
  %v539 = vsel %vm187, %v530, %v524
  %540 = vrot.lane.b32.xlu0 %v377, 111
  %v541 = vpop.permute.xlu0 %540
  %542 = vrot.lane.b32.xlu0 %v378, 111
  %v543 = vpop.permute.xlu0 %542
  %544 = vrot.lane.b32.xlu0 %v379, 111
  %v545 = vpop.permute.xlu0 %544
  %546 = vrot.lane.b32.xlu0 %v380, 111
  %v547 = vpop.permute.xlu0 %546
  %v548 = vsel %vm205, %v541, %v543
  %v549 = vsel %vm205, %v543, %v545
  %v550 = vsel %vm205, %v545, %v547
  %v556 = vsel %vm205, %v547, %v541
  %v557 = vmul.f32 %v437, %v381
  %v558 = vmul.f32 %v430, %v382
  %v559 = vmul.f32 %v431, %v383
  %v560 = vmul.f32 %v432, %v384
  %v561 = vmul.f32 %v454, %v385
  %v562 = vmul.f32 %v447, %v386
  %v563 = vmul.f32 %v448, %v387
  %v564 = vmul.f32 %v449, %v388
  %v565 = vmul.f32 %v471, %v389
  %v566 = vmul.f32 %v464, %v390
  %v567 = vmul.f32 %v465, %v391
  %v568 = vmul.f32 %v466, %v392
  %v569 = vmul.f32 %v488, %v393
  %v570 = vmul.f32 %v481, %v394
  %v571 = vmul.f32 %v482, %v395
  %v572 = vmul.f32 %v483, %v396
  %v573 = vmul.f32 %v377, %v397
  %v574 = vmul.f32 %v378, %v398
  %v575 = vmul.f32 %v379, %v399
  %v576 = vmul.f32 %v380, %v400
  %v577 = vmul.f32 %v497, %v401
  %v578 = vmul.f32 %v498, %v402
  %v579 = vmul.f32 %v499, %v403
  %v580 = vmul.f32 %v505, %v404
  %v581 = vmul.f32 %v514, %v405
  %v582 = vmul.f32 %v515, %v406
  %v583 = vmul.f32 %v516, %v407
  %v584 = vmul.f32 %v522, %v408
  %v585 = vmul.f32 %v531, %v409
  %v586 = vmul.f32 %v532, %v410
  %v587 = vmul.f32 %v533, %v411
  %v588 = vmul.f32 %v539, %v412
  %v589 = vmul.f32 %v548, %v413
  %v590 = vmul.f32 %v549, %v414
  %v591 = vmul.f32 %v550, %v415
  %v592 = vmul.f32 %v556, %v416
  %v593 = vpack.c.bf16 %v561, %v557
  %v594 = vpack.c.bf16 %v562, %v558
  %v595 = vpack.c.bf16 %v563, %v559
  %v596 = vpack.c.bf16 %v564, %v560
  %v597 = vpack.c.bf16 %v569, %v565
  %v598 = vpack.c.bf16 %v570, %v566
  %v599 = vpack.c.bf16 %v571, %v567
  %v600 = vpack.c.bf16 %v572, %v568
  %v601 = vpack.c.bf16 %v577, %v573
  %v602 = vpack.c.bf16 %v578, %v574
  %v603 = vpack.c.bf16 %v579, %v575
  %v604 = vpack.c.bf16 %v580, %v576
  %v605 = vpack.c.bf16 %v585, %v581
  %v606 = vpack.c.bf16 %v586, %v582
  %v607 = vpack.c.bf16 %v587, %v583
  %v608 = vpack.c.bf16 %v588, %v584
  %v609 = vpack.c.bf16 %v589, %v589
  %v610 = vpack.c.bf16 %v590, %v590
  %v611 = vpack.c.bf16 %v591, %v591
  %v612 = vpack.c.bf16 %v592, %v592
  %v613 = vld [vmem:[%s5] sm:$0xf]
  %v614 = vld [vmem:[%s6] sm:$0xff]
  %616 = vset.pattern.permute.xlu0 0
  %617 = vperm.xlu0 %616, %v614
  %v618 = vpop.permute.xlu0 %617
  %v621 = vsel %vm278, %v613, 0
  %v624 = vsel %vm282, %v609, 0
  %v627 = vsel %vm282, %v610, 0
  %v630 = vsel %vm282, %v611, 0
  %v633 = vsel %vm282, %v612, 0
  %635 = vmatprep.subr.bf16.mxu0 0
  %636 = vmatpush1.bf16.msra.mxu0 0
  %637 = vmatprep.subr.bf16.mxu0 0
  %638 = vmatpush1.bf16.msra.mxu0 0
  %639 = vmatprep.subr.bf16.mxu0 0
  %640 = vmatpush1.bf16.msra.mxu0 0
  %641 = vmatprep.subr.bf16.mxu0 %v627
  %642 = vmatpush1.bf16.msra.mxu0 %v624
  %643 = vmatprep.subr.bf16.mxu0 %v606
  %644 = vmatpush1.bf16.msra.mxu0 %v605
  %645 = vmatprep.subr.bf16.mxu0 %v602
  %646 = vmatpush1.bf16.msra.mxu0 %v601
  %647 = vmatprep.subr.bf16.mxu0 %v598
  %648 = vmatpush1.bf16.msra.mxu0 %v597
  %649 = vmatprep.subr.bf16.mxu0 %v594
  %650 = vmatpush1.bf16.msra.mxu0 %v593
  %651 = vmatprep.subr.bf16.mxu0 0
  %652 = vmatpush2.bf16.msra.mxu0 0
  %653 = vmatprep.subr.bf16.mxu0 0
  %654 = vmatpush2.bf16.msra.mxu0 0
  %655 = vmatprep.subr.bf16.mxu0 0
  %656 = vmatpush2.bf16.msra.mxu0 0
  %657 = vmatprep.subr.bf16.mxu0 0
  %658 = vmatpush2.bf16.msra.mxu0 0
  %659 = vmatprep.subr.bf16.mxu0 0
  %660 = vmatpush2.bf16.msra.mxu0 0
  %661 = vmatprep.subr.bf16.mxu0 0
  %662 = vmatpush2.bf16.msra.mxu0 0
  %663 = vmatprep.subr.bf16.mxu0 0
  %664 = vmatpush2.bf16.msra.mxu0 0
  %665 = vmatprep.subr.bf16.mxu0 0
  %666 = vmatpush2.bf16.msra.mxu0 0
  %667 = vmatprep.mubr.bf16.mxu0 0
  %668 = vmatmul.mubr.bf16.gmra.mxu0 %v621
  %v669 = vpop.f32.mrf.mxu0
  %v670 = vadd.f32 %v618, %v669
  %v671 = vpop.f32.mrf.mxu0
  %v672 = vadd.f32 %v618, %v671
  %v673 = vpop.f32.mrf.mxu0
  %v674 = vpop.f32.mrf.mxu0
  %675 = vdwg.mxu0
  %676 = vmatprep.subr.bf16.mxu0 0
  %677 = vmatpush1.bf16.msra.mxu0 0
  %678 = vmatprep.subr.bf16.mxu0 0
  %679 = vmatpush1.bf16.msra.mxu0 0
  %680 = vmatprep.subr.bf16.mxu0 0
  %681 = vmatpush1.bf16.msra.mxu0 0
  %682 = vmatprep.subr.bf16.mxu0 %v633
  %683 = vmatpush1.bf16.msra.mxu0 %v630
  %684 = vmatprep.subr.bf16.mxu0 %v608
  %685 = vmatpush1.bf16.msra.mxu0 %v607
  %686 = vmatprep.subr.bf16.mxu0 %v604
  %687 = vmatpush1.bf16.msra.mxu0 %v603
  %688 = vmatprep.subr.bf16.mxu0 %v600
  %689 = vmatpush1.bf16.msra.mxu0 %v599
  %690 = vmatprep.subr.bf16.mxu0 %v596
  %691 = vmatpush1.bf16.msra.mxu0 %v595
  %692 = vmatprep.subr.bf16.mxu0 0
  %693 = vmatpush2.bf16.msra.mxu0 0
  %694 = vmatprep.subr.bf16.mxu0 0
  %695 = vmatpush2.bf16.msra.mxu0 0
  %696 = vmatprep.subr.bf16.mxu0 0
  %697 = vmatpush2.bf16.msra.mxu0 0
  %698 = vmatprep.subr.bf16.mxu0 0
  %699 = vmatpush2.bf16.msra.mxu0 0
  %700 = vmatprep.subr.bf16.mxu0 0
  %701 = vmatpush2.bf16.msra.mxu0 0
  %702 = vmatprep.subr.bf16.mxu0 0
  %703 = vmatpush2.bf16.msra.mxu0 0
  %704 = vmatprep.subr.bf16.mxu0 0
  %705 = vmatpush2.bf16.msra.mxu0 0
  %706 = vmatprep.subr.bf16.mxu0 0
  %707 = vmatpush2.bf16.msra.mxu0 0
  %708 = vmatprep.mubr.bf16.mxu0 0
  %709 = vmatmul.mubr.bf16.gmra.mxu0 %v621
  %v710 = vpop.f32.mrf.mxu0
  %v711 = vadd.f32 %v618, %v710
  %v712 = vpop.f32.mrf.mxu0
  %v713 = vadd.f32 %v618, %v712
  %v714 = vpop.f32.mrf.mxu0
  %v715 = vpop.f32.mrf.mxu0
  %716 = vdwg.mxu0
  %v717 = vmax.f32 %v670, 0.0
  %v718 = vmax.f32 %v672, 0.0
  %v719 = vmax.f32 %v711, 0.0
  %v720 = vmax.f32 %v713, 0.0
  %721 = vst [vmem:[%s7] sm:$0xff] %v717
  %722 = vst [vmem:[%s7 + $0x8] sm:$0xff] %v718
  %723 = vst [vmem:[%s7 + $0x10] sm:$0xff] %v719
  %724 = vst [vmem:[%s7 + $0x18] sm:$0xff] %v720
  // Predicated region
  $region30: #{double_conv.1} parent=0 // pred_check
    _
  $region31: #{double_conv.1} parent=0 // pred_check_branch
    %726 = sbr.rel (0) target = $region33
  $region32: #{double_conv.1} parent=0 // pred_region
    _
  $region33: #{double_conv.1} parent=0 // pred_fallthru
    _
  // Predicated region
  $region34: #{double_conv.1} parent=0 // pred_check
    _
  $region35: #{double_conv.1} parent=0 // pred_check_branch
    %728 = sbr.rel (0) target = $region37
  $region36: #{double_conv.1} parent=0 // pred_region
    _
  $region37: #{double_conv.1} parent=0 // pred_fallthru
    _

</llo_original>
